<compile_context>
chip_gen: v5e
topology: v5e:2x2
jax: 0.10.0
libtpu: 0.0.40
codegen_flags: <defaults>
</compile_context>

<pallas_src>
import functools
from typing import NamedTuple

import numpy as np
import jax
import jax.numpy as jnp
from jax.experimental import pallas as pl
from jax.experimental.pallas import tpu as pltpu

TASKS = ['seg', 'depth', 'sn', 'keypoint', 'edge']
NUM_OUT = {'seg': 17, 'depth': 1, 'sn': 3, 'keypoint': 1, 'edge': 1}
TASK_NUM = len(TASKS)

_VMEM_LIMIT = 32 * 1024 * 1024   # safe on v5e/v6e/v7x; largest working set ~10 MiB
_MAX_TK = 4608                   # single K pass for every conv in this network


def _round_up(x, m):
    return (x + m - 1) // m * m


def _pick_m(M):
    if M >= 256 and M % 256 == 0:
        return 256, M
    if M >= 128 and M % 128 == 0:
        return 128, M
    if M >= 256:
        return 256, _round_up(M, 256)
    mp = _round_up(M, 16)
    return mp, mp


def _pick_n(N):
    npad = _round_up(N, 128)
    if npad >= 256 and npad % 256 == 0:
        return 256, npad
    if npad > 128:
        return 128, npad
    return npad, npad


def _pick_k(K):
    kp = _round_up(K, 128)
    if kp <= _MAX_TK:
        return kp, kp
    nsplit = -(-kp // _MAX_TK)
    tk = _round_up(-(-kp // nsplit), 128)
    return tk, _round_up(kp, tk)


# ---------------------------------------------------------------------------
# Fused matmul kernels: bf16 MXU operands, fp32 accumulation, fused epilogue,
# bf16 outputs.
# ---------------------------------------------------------------------------
if hasattr(pl, 'reciprocal'):
    def _fast_sigmoid(r):
        # exp goes to the EUP; approximate reciprocal (vrcp) keeps the VALU slot free.
        return pl.reciprocal(1.0 + jnp.exp(-r), approx=True)
else:  # older jax fallback
    def _fast_sigmoid(r):
        return 1.0 / (1.0 + jnp.exp(-r))


def _epilogue(r, e_ref, mode):
    if mode == 'relu':
        return jnp.maximum(r, 0.0)
    if mode == 'sigmoid':
        return _fast_sigmoid(r)
    if mode == 'add_relu':                       # fused residual add + ReLU
        return jnp.maximum(r + e_ref[...].astype(jnp.float32), 0.0)
    if mode == 'mul_sigmoid':                    # fused attention: sigmoid(conv) * feature
        return _fast_sigmoid(r) * e_ref[...].astype(jnp.float32)
    return r


def _mm1_kernel(*refs, mode, has_extra):
    """Single K pass: no k grid axis, no accumulator scratch."""
    if has_extra:
        a_ref, b_ref, bias_ref, e_ref, o_ref = refs
    else:
        a_ref, b_ref, bias_ref, o_ref = refs
        e_ref = None
    r = jnp.dot(a_ref[...], b_ref[...], preferred_element_type=jnp.float32)
    r = r + bias_ref[...]
    o_ref[...] = _epilogue(r, e_ref, mode).astype(o_ref.dtype)


def _mm_kernel(*refs, mode, has_extra):
    """Multi K pass fallback (K > _MAX_TK): fp32 VMEM accumulator + pl.when epilogue."""
    if has_extra:
        a_ref, b_ref, bias_ref, e_ref, o_ref, acc_ref = refs
    else:
        a_ref, b_ref, bias_ref, o_ref, acc_ref = refs
        e_ref = None
    k = pl.program_id(2)

    @pl.when(k == 0)
    def _():
        acc_ref[...] = jnp.zeros_like(acc_ref)

    acc_ref[...] += jnp.dot(a_ref[...], b_ref[...],
                            preferred_element_type=jnp.float32)

    @pl.when(k == pl.num_programs(2) - 1)
    def _():
        r = acc_ref[...] + bias_ref[...]
        o_ref[...] = _epilogue(r, e_ref, mode).astype(o_ref.dtype)


_MM_CACHE = {}


def _get_mm_call(Mp, Kp, Np, TM, TN, TK, mode, has_extra):
    key = (Mp, Kp, Np, TM, TN, TK, mode, has_extra)
    fn = _MM_CACHE.get(key)
    if fn is not None:
        return fn
    nk = Kp // TK
    if nk == 1:
        in_specs = [
            pl.BlockSpec((TM, Kp), lambda i, j: (i, 0)),
            pl.BlockSpec((Kp, TN), lambda i, j: (0, j)),
            pl.BlockSpec((1, TN), lambda i, j: (0, j)),
        ]
        if has_extra:
            in_specs.append(pl.BlockSpec((TM, TN), lambda i, j: (i, j)))
        fn = pl.pallas_call(
            functools.partial(_mm1_kernel, mode=mode, has_extra=has_extra),
            out_shape=jax.ShapeDtypeStruct((Mp, Np), jnp.bfloat16),
            grid_spec=pltpu.PrefetchScalarGridSpec(
                num_scalar_prefetch=0,
                grid=(Mp // TM, Np // TN),
                in_specs=in_specs,
                out_specs=pl.BlockSpec((TM, TN), lambda i, j: (i, j))),
            compiler_params=pltpu.CompilerParams(
                dimension_semantics=("parallel", "parallel"),
                vmem_limit_bytes=_VMEM_LIMIT),
        )
    else:
        in_specs = [
            pl.BlockSpec((TM, TK), lambda i, j, k: (i, k)),
            pl.BlockSpec((TK, TN), lambda i, j, k: (k, j)),
            pl.BlockSpec((1, TN), lambda i, j, k: (0, j)),
        ]
        if has_extra:
            in_specs.append(pl.BlockSpec((TM, TN), lambda i, j, k: (i, j)))
        fn = pl.pallas_call(
            functools.partial(_mm_kernel, mode=mode, has_extra=has_extra),
            out_shape=jax.ShapeDtypeStruct((Mp, Np), jnp.bfloat16),
            grid_spec=pltpu.PrefetchScalarGridSpec(
                num_scalar_prefetch=0,
                grid=(Mp // TM, Np // TN, nk),
                in_specs=in_specs,
                out_specs=pl.BlockSpec((TM, TN), lambda i, j, k: (i, j)),
                scratch_shapes=[pltpu.VMEM((TM, TN), jnp.float32)]),
            compiler_params=pltpu.CompilerParams(
                dimension_semantics=("parallel", "parallel", "arbitrary"),
                vmem_limit_bytes=_VMEM_LIMIT),
        )
    _MM_CACHE[key] = fn
    return fn


# ---------------------------------------------------------------------------
# Conv weights are pre-packed once at init into padded bf16 matmul form.
# ---------------------------------------------------------------------------
class ConvMeta(NamedTuple):
    KH: int
    KW: int
    Cin: int
    Cout: int
    K: int
    N: int
    Kp: int
    Np: int
    TK: int
    TN: int


def _prep(w, b=None, fold=True, eps=1e-5):
    """Fold eval-mode BN (fresh stats) and pack the weight as a padded bf16 (Kp,Np) matrix."""
    Cout, Cin, KH, KW = w.shape
    if fold:
        scale = 1.0 / np.sqrt(1.0 + eps)       # gamma=1, var=1, mean=0, beta=0
        w = w * scale
        b = (jnp.zeros((Cout,), jnp.float32) if b is None else b) * scale
    elif b is None:
        b = jnp.zeros((Cout,), jnp.float32)
    K, N = KH * KW * Cin, Cout
    TK, Kp = _pick_k(K)
    TN, Np = _pick_n(N)
    wm = jnp.transpose(w, (2, 3, 1, 0)).reshape(K, N)       # rows: (kh, kw, cin)
    wm = jnp.pad(wm, ((0, Kp - K), (0, Np - N))).astype(jnp.bfloat16)
    bp = jnp.pad(jnp.asarray(b, jnp.float32).reshape(1, N), ((0, 0), (0, Np - N)))
    return {'w': wm, 'b': bp,
            'meta': ConvMeta(KH, KW, Cin, Cout, K, N, Kp, Np, TK, TN)}


def _matmul_fused(a, w_p, bias_p, meta, extra=None, mode='none'):
    M, K = a.shape
    assert K == meta.K
    TM, Mp = _pick_m(M)
    a_p = jnp.pad(a.astype(jnp.bfloat16), ((0, Mp - M), (0, meta.Kp - K)))
    args = [a_p, w_p, bias_p]
    if extra is not None:
        args.append(jnp.pad(extra.astype(jnp.bfloat16),
                            ((0, Mp - M), (0, meta.Np - meta.N))))
    fn = _get_mm_call(Mp, meta.Kp, meta.Np, TM, meta.TN, meta.TK, mode,
                      extra is not None)
    out = fn(*args)
    return out[:M, :meta.N]


@functools.partial(jax.jit,
                   static_argnames=('meta', 'stride', 'padding', 'dilation', 'act'))
def _conv2d_impl(x, w, bias, extra, *, meta, stride, padding, dilation, act):
    B, H, W, Cin = x.shape
    KH, KW, Cout = meta.KH, meta.KW, meta.Cout
    assert KH * KW * Cin == meta.K
    Ho = (H + 2 * padding - dilation * (KH - 1) - 1) // stride + 1
    Wo = (W + 2 * padding - dilation * (KW - 1) - 1) // stride + 1
    if KH == 1 and KW == 1 and padding == 0:
        xs = x[:, ::stride, ::stride, :] if stride > 1 else x
        patches = xs.reshape(B * Ho * Wo, Cin)
    else:
        xp = jnp.pad(x, ((0, 0), (padding, padding), (padding, padding), (0, 0)))
        cols = []
        for kh in range(KH):
            for kw in range(KW):
                hs, ws = kh * dilation, kw * dilation
                cols.append(xp[:, hs:hs + stride * (Ho - 1) + 1:stride,
                               ws:ws + stride * (Wo - 1) + 1:stride, :])
        patches = jnp.concatenate(cols, axis=-1).reshape(B * Ho * Wo, KH * KW * Cin)
    ex = extra.reshape(B * Ho * Wo, Cout) if extra is not None else None
    out = _matmul_fused(patches, w, bias, meta, extra=ex, mode=act)
    return out.reshape(B, Ho, Wo, Cout)


def conv2d(x, cp, *, stride=1, padding=0, dilation=1, act='none', extra=None):
    return _conv2d_impl(x, cp['w'], cp['b'], extra, meta=cp['meta'],
                        stride=stride, padding=padding, dilation=dilation, act=act)


# ---------------------------------------------------------------------------
# Max-pool: elementwise-max Pallas kernel over the k*k shifted bf16 views
# ---------------------------------------------------------------------------
def _maxk_kernel(*refs):
    o_ref = refs[-1]
    acc = refs[0][...]
    for r in refs[1:-1]:
        acc = jnp.maximum(acc, r[...])
    o_ref[...] = acc


def _pick_rows(M):
    for t in (512, 256, 128):
        if M >= t and M % t == 0:
            return t, M
    mp = _round_up(M, 8)
    return mp, mp


@functools.partial(jax.jit, static_argnames=('k', 'stride', 'pad'))
def maxpool2d(x, *, k, stride, pad):
    B, H, W, C = x.shape
    Ho = (H + 2 * pad - k) // stride + 1
    Wo = (W + 2 * pad - k) // stride + 1
    xp = x if pad == 0 else jnp.pad(
        x, ((0, 0), (pad, pad), (pad, pad), (0, 0)), constant_values=-1e30)
    views = []
    for kh in range(k):
        for kw in range(k):
            v = xp[:, kh:kh + stride * (Ho - 1) + 1:stride,
                   kw:kw + stride * (Wo - 1) + 1:stride, :]
            views.append(v.reshape(B * Ho * Wo, C))
    M = B * Ho * Wo
    Cp = _round_up(C, 128)
    TR, Mp = _pick_rows(M)
    padded = [jnp.pad(v, ((0, Mp - M), (0, Cp - C)), constant_values=-1e30)
              for v in views]
    fn = pl.pallas_call(
        _maxk_kernel,
        out_shape=jax.ShapeDtypeStruct((Mp, Cp), x.dtype),
        grid=(Mp // TR,),
        in_specs=[pl.BlockSpec((TR, Cp), lambda i: (i, 0)) for _ in views],
        out_specs=pl.BlockSpec((TR, Cp), lambda i: (i, 0)),
        compiler_params=pltpu.CompilerParams(dimension_semantics=("parallel",)),
    )
    out = fn(*padded)
    return out[:M, :C].reshape(B, Ho, Wo, C)


# ---------------------------------------------------------------------------
# Global average pool: small VPU/XLU reduction kernel (fp32 sum of bf16 input)
# ---------------------------------------------------------------------------
def _gap_kernel(x_ref, o_ref, *, inv):
    o_ref[...] = jnp.sum(x_ref[...].astype(jnp.float32), axis=1) * inv


@jax.jit
def global_avg_pool(x):
    B, H, W, C = x.shape
    fn = pl.pallas_call(
        functools.partial(_gap_kernel, inv=1.0 / (H * W)),
        out_shape=jax.ShapeDtypeStruct((B, C), jnp.float32))
    return fn(x.reshape(B, H * W, C)).reshape(B, 1, 1, C)


# ---------------------------------------------------------------------------
# Bilinear upsample (align_corners=True) of the tiny final logits: plain jnp
# (K=8 padded-MXU matmuls would be >90% wasted MACs).
# ---------------------------------------------------------------------------
def _interp_matrix(out_size, in_size):
    A = np.zeros((out_size, in_size), np.float32)
    if in_size == 1:
        A[:, 0] = 1.0
        return jnp.asarray(A)
    for i in range(out_size):
        src = i * (in_size - 1) / (out_size - 1) if out_size > 1 else 0.0
        i0 = min(int(np.floor(src)), in_size - 1)
        i1 = min(i0 + 1, in_size - 1)
        f = src - i0
        A[i, i0] += 1.0 - f
        A[i, i1] += f
    return jnp.asarray(A)


def bilinear_upsample_nchw(x, OH, OW):
    """x: (B,h,w,C) NHWC -> (B,C,OH,OW) NCHW (module-boundary layout), fp32."""
    B, h, w, C = x.shape
    Ah = _interp_matrix(OH, h)
    Aw = _interp_matrix(OW, w)
    xf = x.astype(jnp.float32)
    y = jnp.einsum('oh,bhwc->bowc', Ah, xf)
    y = jnp.einsum('pw,bowc->bopc', Aw, y)
    return jnp.transpose(y, (0, 3, 1, 2))


# ---------------------------------------------------------------------------
# Parameters (deterministic init; eval-mode BatchNorm folded into convs)
# ---------------------------------------------------------------------------
# Dilated resnet18 (ResnetDilated, dilate_scale=8) block configuration.
LAYER_CFG = {
    1: (64, 64, [dict(stride=1, d1=1, p1=1, d2=1, p2=1, ds=False),
                 dict(stride=1, d1=1, p1=1, d2=1, p2=1, ds=False)]),
    2: (64, 128, [dict(stride=2, d1=1, p1=1, d2=1, p2=1, ds=True, ds_stride=2),
                  dict(stride=1, d1=1, p1=1, d2=1, p2=1, ds=False)]),
    3: (128, 256, [dict(stride=1, d1=1, p1=1, d2=2, p2=2, ds=True, ds_stride=1),
                   dict(stride=1, d1=2, p1=2, d2=2, p2=2, ds=False)]),
    4: (256, 512, [dict(stride=1, d1=2, p1=2, d2=4, p2=4, ds=True, ds_stride=1),
                   dict(stride=1, d1=4, p1=4, d2=4, p2=4, ds=False)]),
}

ATT_DIMS = {1: (64, 16, 64), 2: (256, 32, 128), 3: (512, 64, 256), 4: (1024, 128, 512)}
BNECK_DIMS = {1: (64, 32), 2: (128, 64), 3: (256, 128)}


def init_params(key):
    state = {'k': key}

    def nk():
        state['k'], sub = jax.random.split(state['k'])
        return sub

    def conv_w(cout, cin, kh, kw):
        fan = cin * kh * kw
        return jax.random.normal(nk(), (cout, cin, kh, kw), jnp.float32) * np.sqrt(2.0 / fan)

    def bias(cout):
        return jax.random.normal(nk(), (cout,), jnp.float32) * 0.01

    P = {'conv1': _prep(conv_w(64, 3, 7, 7))}                      # conv1 + bn1

    P['layers'] = {}
    for li, (cin, cout, blocks) in LAYER_CFG.items():
        blks, c_prev = [], cin
        for cfg in blocks:
            bp = {'conv1': _prep(conv_w(cout, c_prev, 3, 3)),
                  'conv2': _prep(conv_w(cout, cout, 3, 3))}
            if cfg['ds']:
                bp['ds'] = _prep(conv_w(cout, c_prev, 1, 1))
            blks.append(bp)
            c_prev = cout
        P['layers'][li] = blks

    P['att'] = {}
    for li, (cin, mid, cout) in ATT_DIMS.items():
        P['att'][li] = [{'c1': _prep(conv_w(mid, cin, 1, 1), bias(mid)),
                         'c2': _prep(conv_w(cout, mid, 1, 1), bias(cout))}
                        for _ in TASKS]

    P['att_block'] = {}
    for li, (cin, planes) in BNECK_DIMS.items():
        P['att_block'][li] = {
            'conv1': _prep(conv_w(planes, cin, 1, 1)),
            'conv2': _prep(conv_w(planes, planes, 3, 3)),
            'conv3': _prep(conv_w(4 * planes, planes, 1, 1)),
            'ds':    _prep(conv_w(4 * planes, cin, 1, 1)),
        }

    P['decoders'] = []
    for t in TASKS:
        nout = NUM_OUT[t]
        P['decoders'].append(dict(
            b0=_prep(conv_w(256, 512, 1, 1)),
            b1=_prep(conv_w(256, 512, 3, 3)),
            b2=_prep(conv_w(256, 512, 3, 3)),
            b3=_prep(conv_w(256, 512, 3, 3)),
            pool=_prep(conv_w(256, 512, 1, 1)),
            proj=_prep(conv_w(256, 5 * 256, 1, 1)),
            head=_prep(conv_w(256, 256, 3, 3)),
            cls=_prep(conv_w(nout, 256, 1, 1), bias(nout), fold=False),
        ))
    return P


# ---------------------------------------------------------------------------
# Forward pass (mirrors MTANDeepLabv3.forward)
# ---------------------------------------------------------------------------
def basic_block(x, p, cfg):
    out = conv2d(x, p['conv1'], stride=cfg['stride'], padding=cfg['p1'],
                 dilation=cfg['d1'], act='relu')
    if cfg['ds']:
        identity = conv2d(x, p['ds'], stride=cfg.get('ds_stride', 1), act='none')
    else:
        identity = x
    return conv2d(out, p['conv2'], stride=1, padding=cfg['p2'],
                  dilation=cfg['d2'], act='add_relu', extra=identity)


def bottleneck(x, p):
    out = conv2d(x, p['conv1'], act='relu')
    out = conv2d(out, p['conv2'], padding=1, act='relu')
    identity = conv2d(x, p['ds'], act='none')
    return conv2d(out, p['conv3'], act='add_relu', extra=identity)


def att_apply(x, p, u_t):
    """att_layer (1x1 conv -> relu -> 1x1 conv -> sigmoid) fused with the mask*u_t multiply."""
    h = conv2d(x, p['c1'], act='relu')
    return conv2d(h, p['c2'], act='mul_sigmoid', extra=u_t)


def deeplab_head(x, p):
    B, H, W, _ = x.shape
    b0 = conv2d(x, p['b0'], act='relu')
    b1 = conv2d(x, p['b1'], padding=12, dilation=12, act='relu')
    b2 = conv2d(x, p['b2'], padding=24, dilation=24, act='relu')
    b3 = conv2d(x, p['b3'], padding=36, dilation=36, act='relu')
    gp = global_avg_pool(x)
    bp = conv2d(gp, p['pool'], act='relu')
    bp = jnp.broadcast_to(bp, (B, H, W, bp.shape[-1]))   # 1x1 -> HxW bilinear == broadcast
    y = jnp.concatenate([b0, b1, b2, b3, bp], axis=-1)
    y = conv2d(y, p['proj'], act='relu')
    # Dropout(0.5) is identity at inference.
    y = conv2d(y, p['head'], padding=1, act='relu')
    return conv2d(y, p['cls'], act='none')


def forward(x_nchw, params):
    img_h, img_w = x_nchw.shape[-2], x_nchw.shape[-1]
    B = x_nchw.shape[0]
    x = jnp.transpose(x_nchw, (0, 2, 3, 1)).astype(jnp.bfloat16)   # NHWC, bf16 internally

    # shared_conv: conv1 + bn1 + relu + maxpool(3,2,1)
    x = conv2d(x, params['conv1'], stride=2, padding=3, act='relu')
    x = maxpool2d(x, k=3, stride=2, pad=1)

    def blk(inp, li, bi):
        return basic_block(inp, params['layers'][li][bi], LAYER_CFG[li][2][bi])

    u1b = blk(x, 1, 0);   u1t = blk(u1b, 1, 1)
    u2b = blk(u1t, 2, 0); u2t = blk(u2b, 2, 1)
    u3b = blk(u2t, 3, 0); u3t = blk(u3b, 3, 1)
    u4b = blk(u3t, 4, 0); u4t = blk(u4b, 4, 1)

    # Level 1: per-task attention (weights differ per task), then the task-shared
    # bottleneck + maxpool batched over all 5 tasks along the batch/M axis.
    a1 = jnp.concatenate(
        [att_apply(u1b, params['att'][1][i], u1t) for i in range(TASK_NUM)], axis=0)
    a1 = bottleneck(a1, params['att_block'][1])
    a1 = maxpool2d(a1, k=2, stride=2, pad=0)

    # Level 2
    a2 = jnp.concatenate(
        [att_apply(jnp.concatenate([u2b, a1[i * B:(i + 1) * B]], axis=-1),
                   params['att'][2][i], u2t) for i in range(TASK_NUM)], axis=0)
    a2 = bottleneck(a2, params['att_block'][2])

    # Level 3
    a3 = jnp.concatenate(
        [att_apply(jnp.concatenate([u3b, a2[i * B:(i + 1) * B]], axis=-1),
                   params['att'][3][i], u3t) for i in range(TASK_NUM)], axis=0)
    a3 = bottleneck(a3, params['att_block'][3])

    # Level 4 + per-task decoders (per-task weights)
    out = {}
    for i, t in enumerate(TASKS):
        a4 = att_apply(jnp.concatenate([u4b, a3[i * B:(i + 1) * B]], axis=-1),
                       params['att'][4][i], u4t)
        dec = deeplab_head(a4, params['decoders'][i])
        out[t] = bilinear_upsample_nchw(dec, img_h, img_w)
    return out


# ---------------------------------------------------------------------------
if __name__ == "__main__":
    root = jax.random.PRNGKey(0)
    pkey, xkey = jax.random.split(root)
    params = init_params(pkey)
    x = jax.random.normal(xkey, (2, 3, 64, 64), jnp.float32)

    out = forward(x, params)
    for t in TASKS:
        o = jax.block_until_ready(out[t])
        assert o.shape == (2, NUM_OUT[t], 64, 64), (t, o.shape)
        assert bool(jnp.all(jnp.isfinite(o))), t
    print("KERNEL_OK")
</pallas_src>

<mosaic_0001>
module attributes {stable_mosaic.version = 11 : i64} {
  func.func @_mm1_kernel(%arg0: i32, %arg1: i32, %arg2: memref<256x256xbf16, #tpu.memory_space<vmem>>, %arg3: memref<256x128xbf16, #tpu.memory_space<vmem>>, %arg4: memref<1x128xf32, #tpu.memory_space<vmem>>, %arg5: memref<256x128xbf16, #tpu.memory_space<vmem>>) attributes {dimension_semantics = [#tpu.dimension_semantics<parallel>, #tpu.dimension_semantics<parallel>], iteration_bounds = array<i64: 8, 1>, scalar_prefetch = 0 : i64, scratch_operands = 0 : i64, tpu.core_type = #tpu.core_type<tc>, window_params = [{transform_indices = @transform_0, window_bounds = array<i64: 256, 256>}, {transform_indices = @transform_1, window_bounds = array<i64: 256, 128>}, {transform_indices = @transform_2, window_bounds = array<i64: 1, 128>}, {transform_indices = @transform_3, window_bounds = array<i64: 256, 128>}]} {
    %c0 = arith.constant 0 : index
    %c0_0 = arith.constant 0 : index
    %0 = vector.load %arg2[%c0, %c0_0] : memref<256x256xbf16, #tpu.memory_space<vmem>>, vector<256x256xbf16>
    %c0_1 = arith.constant 0 : index
    %c0_2 = arith.constant 0 : index
    %1 = vector.load %arg3[%c0_1, %c0_2] : memref<256x128xbf16, #tpu.memory_space<vmem>>, vector<256x128xbf16>
    %cst = arith.constant dense<0.000000e+00> : vector<256x128xf32>
    %2 = tpu.matmul %0, %1, %cst {dimension_numbers = #tpu.dot_dimension_numbers<[1], [0], [0], [1], [0, 0, 1, 1], [], []>} : vector<256x256xbf16>, vector<256x128xbf16>, vector<256x128xf32> -> vector<256x128xf32>
    %c0_3 = arith.constant 0 : index
    %c0_4 = arith.constant 0 : index
    %3 = vector.load %arg4[%c0_3, %c0_4] : memref<1x128xf32, #tpu.memory_space<vmem>>, vector<1x128xf32>
    %4 = vector.broadcast %3 : vector<1x128xf32> to vector<256x128xf32>
    %5 = arith.addf %2, %4 : vector<256x128xf32>
    %cst_5 = arith.constant 0.000000e+00 : f32
    %6 = vector.broadcast %cst_5 : f32 to vector<256x128xf32>
    %7 = arith.maximumf %5, %6 : vector<256x128xf32>
    %8 = arith.truncf %7 : vector<256x128xf32> to vector<256x128xbf16>
    %c0_6 = arith.constant 0 : index
    %c0_7 = arith.constant 0 : index
    %9 = vector.load %arg5[%c0_6, %c0_7] : memref<256x128xbf16, #tpu.memory_space<vmem>>, vector<256x128xbf16>
    tpu.vector_store %arg5[%c0_6, %c0_7], %8 {strides = array<i32>} : memref<256x128xbf16, #tpu.memory_space<vmem>>, vector<256x128xbf16>,
    return
  }
  func.func @transform_0(%arg0: i32, %arg1: i32) -> (i32, i32) {
    %c0_i32 = arith.constant 0 : i32
    %c0_i32_0 = arith.constant 0 : i32
    return %arg0, %c0_i32 : i32, i32
  }
  func.func @transform_1(%arg0: i32, %arg1: i32) -> (i32, i32) {
    %c0_i32 = arith.constant 0 : i32
    %c0_i32_0 = arith.constant 0 : i32
    return %c0_i32, %arg1 : i32, i32
  }
  func.func @transform_2(%arg0: i32, %arg1: i32) -> (i32, i32) {
    %c0_i32 = arith.constant 0 : i32
    %c0_i32_0 = arith.constant 0 : i32
    return %c0_i32, %arg1 : i32, i32
  }
  func.func @transform_3(%arg0: i32, %arg1: i32) -> (i32, i32) {
    %c0_i32 = arith.constant 0 : i32
    return %arg0, %arg1 : i32, i32
  }
}

</mosaic_0001>

<llo_original>
// kernel: _conv2d_impl.1
$region0: #{_conv2d_impl.1}
  #allocation0 [shape = 'u32[]', space=smem, size = 0x4, offset = 0x4, fixed_abs, tag = 'smem constant byte address 0x4 - core index']
  #allocation1 [shape = 'u32[72,128]{1,0:T(1,128)}', space=vmem, size = 0x9000, scoped, tag = 'internal scratch']
  %s0 = inlined_call_operand.vmem [shape: bf16[2048,256], index: 0, kind: input, shape index: {}]
  %s1 = inlined_call_operand.vmem [shape: bf16[256,128], index: 1, kind: input, shape index: {}]
  %s2 = inlined_call_operand.vmem [shape: f32[1,128], index: 2, kind: input, shape index: {}]
  %s3 = inlined_call_operand.hbm [shape: bf16[2048,128], index: 3, kind: output, shape index: {}]
  %s4 = sld [smem:[#allocation0]]
  $region45: #{_conv2d_impl.1} parent=0
    _
  %s6 = ssub.s32 1, %s4
  %s7 = scalar_select 0, %s6, %s4
  $region1: #{_conv2d_impl.1} parent=0
    #allocation2 [shape = 'u8[131072]{0}', space=vmem, size = 0x20000, scoped, tag = 'output window, operand 0']
    #allocation3 [shape = 's32[2]{0}', space=sflag, size = 0x8, scoped, tag = 'scoped memory for _conv2d_impl.1']
    %8 = vsyncpa [#allocation3], 0
    %s9 = scalar_lea.sflag [#allocation3], 1
    %10 = vsyncpa %s9, 0
    loop: start=0, step=1, limit=10
    $region2: #{_conv2d_impl.1} parent=1 // loop_pre_header
      _
    $region3: #{_conv2d_impl.1} parent=1 // loop_header
      %s12 = sphi 0, %s16
      %p13 = scmp.ge.s32.totalorder %s12, 10
      %s19 = sphi 0, %s31
      %s20 = sphi 0, %s27
      %s21 = sphi 0, %s19
      %s22 = sphi 0, %s20
      %s23 = sphi 0, %s21
      %s24 = sphi 0, %s22
      %s34 = sphi 0, %s36
      %s37 = sphi 0, %s34
      %s38 = sphi 0, %s37
      %s54 = sphi 0, %s38
      %s60 = sphi 0, %s62
      %s63 = sphi 0, %s60
      %s64 = sphi 0, %s63
      %s80 = sphi 0, %s64
      %s86 = sphi 0, %s88
      %s89 = sphi 0, %s86
      %s90 = sphi 0, %s89
      %s106 = sphi 0, %s90
      %s114 = sphi 0, %s116
      %s117 = sphi 0, %s114
      %s118 = sphi 0, %s117
      %s134 = sphi 0, %s118
    $region4: #{_conv2d_impl.1} parent=1 // loop_header_branch
      %15 = sbr.rel (%p13) target = $region8
    $region5: #{_conv2d_impl.1} parent=1 // loop_body
      %s17 = ssub.s32 %s12, 1
      %s18 = ssub.s32 %s12, 2
      %s25 = sadd.s32 1, %s20
      %p26 = scmp.ge.s32.totalorder %s25, 1
      %s27 = scalar_select %p26, 0, %s25
      %s28 = sadd.s32 1, %s19
      %s29 = scalar_select %p26, %s28, %s19
      %p30 = scmp.ge.s32.totalorder %s29, 8
      %s31 = scalar_select %p30, 0, %s29
      %s32 = ssub.s32 %s19, %s31
      %p33 = scmp.eq.s32.totalorder %s32, 0
      %s35 = sadd.s32 %s34, 1
      %s36 = scalar_select %p33, %s34, %s35
      %p39 = pneg %p33
      %p40 = scmp.eq.s32.totalorder %s12, 7
      %p41 = por %p39, %p40
      %p42 = scmp.ne.s32.totalorder %s34, %s37
      %p43 = scmp.eq.s32.totalorder %s12, 0
      %p44 = por %p42, %p43
      %p45 = scmp.ne.s32.totalorder %s34, %s37
      %p46 = scmp.eq.s32.totalorder %s17, 7
      %p47 = por %p45, %p46
      %p48 = scmp.ne.s32.totalorder %s37, %s38
      %p49 = scmp.eq.s32.totalorder %s17, 0
      %p50 = por %p48, %p49
      %p51 = scmp.ne.s32.totalorder %s37, %s38
      %p52 = scmp.eq.s32.totalorder %s18, 7
      %p53 = por %p51, %p52
      %p55 = scmp.ne.s32.totalorder %s38, %s54
      %p56 = scmp.eq.s32.totalorder %s18, 0
      %p57 = por %p55, %p56
      %s58 = ssub.s32 %s20, %s27
      %p59 = scmp.eq.s32.totalorder %s58, 0
      %s61 = sadd.s32 %s60, 1
      %s62 = scalar_select %p59, %s60, %s61
      %p65 = pneg %p59
      %p66 = scmp.eq.s32.totalorder %s12, 7
      %p67 = por %p65, %p66
      %p68 = scmp.ne.s32.totalorder %s60, %s63
      %p69 = scmp.eq.s32.totalorder %s12, 0
      %p70 = por %p68, %p69
      %p71 = scmp.ne.s32.totalorder %s60, %s63
      %p72 = scmp.eq.s32.totalorder %s17, 7
      %p73 = por %p71, %p72
      %p74 = scmp.ne.s32.totalorder %s63, %s64
      %p75 = scmp.eq.s32.totalorder %s17, 0
      %p76 = por %p74, %p75
      %p77 = scmp.ne.s32.totalorder %s63, %s64
      %p78 = scmp.eq.s32.totalorder %s18, 7
      %p79 = por %p77, %p78
      %p81 = scmp.ne.s32.totalorder %s64, %s80
      %p82 = scmp.eq.s32.totalorder %s18, 0
      %p83 = por %p81, %p82
      %s84 = ssub.s32 %s20, %s27
      %p85 = scmp.eq.s32.totalorder %s84, 0
      %s87 = sadd.s32 %s86, 1
      %s88 = scalar_select %p85, %s86, %s87
      %p91 = pneg %p85
      %p92 = scmp.eq.s32.totalorder %s12, 7
      %p93 = por %p91, %p92
      %p94 = scmp.ne.s32.totalorder %s86, %s89
      %p95 = scmp.eq.s32.totalorder %s12, 0
      %p96 = por %p94, %p95
      %p97 = scmp.ne.s32.totalorder %s86, %s89
      %p98 = scmp.eq.s32.totalorder %s17, 7
      %p99 = por %p97, %p98
      %p100 = scmp.ne.s32.totalorder %s89, %s90
      %p101 = scmp.eq.s32.totalorder %s17, 0
      %p102 = por %p100, %p101
      %p103 = scmp.ne.s32.totalorder %s89, %s90
      %p104 = scmp.eq.s32.totalorder %s18, 7
      %p105 = por %p103, %p104
      %p107 = scmp.ne.s32.totalorder %s90, %s106
      %p108 = scmp.eq.s32.totalorder %s18, 0
      %p109 = por %p107, %p108
      %s110 = ssub.s32 %s19, %s31
      %s111 = ssub.s32 %s20, %s27
      %s112 = sor.u32 %s110, %s111
      %p113 = scmp.eq.s32.totalorder %s112, 0
      %s115 = sadd.s32 %s114, 1
      %s116 = scalar_select %p113, %s114, %s115
      %p119 = pneg %p113
      %p120 = scmp.eq.s32.totalorder %s12, 7
      %p121 = por %p119, %p120
      %p122 = scmp.ne.s32.totalorder %s114, %s117
      %p123 = scmp.eq.s32.totalorder %s12, 0
      %p124 = por %p122, %p123
      %p125 = scmp.ne.s32.totalorder %s114, %s117
      %p126 = scmp.eq.s32.totalorder %s17, 7
      %p127 = por %p125, %p126
      %p128 = scmp.ne.s32.totalorder %s117, %s118
      %p129 = scmp.eq.s32.totalorder %s17, 0
      %p130 = por %p128, %p129
      %p131 = scmp.ne.s32.totalorder %s117, %s118
      %p132 = scmp.eq.s32.totalorder %s18, 7
      %p133 = por %p131, %p132
      %p135 = scmp.ne.s32.totalorder %s118, %s134
      %p136 = scmp.eq.s32.totalorder %s18, 0
      %p137 = por %p135, %p136
      %p138 = scmp.le.s32.totalorder 1, %s12
      %p139 = scmp.lt.s32.totalorder %s12, 9
      %p140 = pnand %p138, %p139
      %p141 = pneg %p140
      // Predicated region
      $region9: #{_conv2d_impl.1} parent=5 // pred_check
        _
      $region10: #{_conv2d_impl.1} parent=5 // pred_check_branch
        %143 = sbr.rel (%p140) target = $region12
      $region11: #{_conv2d_impl.1} parent=5 // pred_region
        %s144 = ssub.s32 %s12, 1
        // Predicated region
        $region13: #{_conv2d_impl.1} parent=11 // pred_check
          %p145 = pneg %p76
        $region14: #{_conv2d_impl.1} parent=11 // pred_check_branch
          %147 = sbr.rel (%p145) target = $region16
        $region15: #{_conv2d_impl.1} parent=11 // pred_region
          %p148 = scmp.lt.s32.totalorder %s22, 0
          %s149 = scalar_select %p148, %s22, 0
          %s150 = smul.addr %s149, 4
          %s151 = scalar_lea.vmem %s1, %s150
        $region16: #{_conv2d_impl.1} parent=11 // pred_fallthru
          _
        // Predicated region
        $region17: #{_conv2d_impl.1} parent=11 // pred_check
          %p152 = pneg %p102
        $region18: #{_conv2d_impl.1} parent=11 // pred_check_branch
          %154 = sbr.rel (%p152) target = $region20
        $region19: #{_conv2d_impl.1} parent=11 // pred_region
          %p155 = scmp.lt.s32.totalorder %s22, 0
          %s156 = scalar_select %p155, %s22, 0
          %s157 = scalar_lea.vmem %s2, %s156
        $region20: #{_conv2d_impl.1} parent=11 // pred_fallthru
          _
      $region12: #{_conv2d_impl.1} parent=5 // pred_fallthru
        _
      %p158 = scmp.lt.s32.totalorder %s12, 8
      // Predicated region
      $region21: #{_conv2d_impl.1} parent=5 // pred_check
        %p159 = pneg %p158
      $region22: #{_conv2d_impl.1} parent=5 // pred_check_branch
        %161 = sbr.rel (%p159) target = $region24
      $region23: #{_conv2d_impl.1} parent=5 // pred_region
        // Predicated region
        $region25: #{_conv2d_impl.1} parent=23 // pred_check
          %p162 = pneg %p44
        $region26: #{_conv2d_impl.1} parent=23 // pred_check_branch
          %164 = sbr.rel (%p162) target = $region28
        $region27: #{_conv2d_impl.1} parent=23 // pred_region
          %s165 = smul.u32 32, %s19
          %p166 = scmp.lt.s32.totalorder %s165, 255
          %s167 = scalar_select %p166, %s165, 255
          %s168 = smul.addr %s167, 2
          %s169 = smul.addr %s168, 4
          %s170 = scalar_lea.vmem %s0, %s169
          %s171 = smul.u32 32, %s19
        $region28: #{_conv2d_impl.1} parent=23 // pred_fallthru
          _
      $region24: #{_conv2d_impl.1} parent=5 // pred_fallthru
        _
      %p172 = scmp.le.s32.totalorder 1, %s12
      %p173 = scmp.lt.s32.totalorder %s12, 9
      %p174 = pnand %p172, %p173
      %p175 = pneg %p174
      // Predicated region
      $region29: #{_conv2d_impl.1} parent=5 // pred_check
        _
      $region30: #{_conv2d_impl.1} parent=5 // pred_check_branch
        %177 = sbr.rel (%p174) target = $region32
      $region31: #{_conv2d_impl.1} parent=5 // pred_region
        %s178 = ssub.s32 %s12, 1
        %s179 = smul.u32 32, %s21
        %p180 = scmp.lt.s32.totalorder %s179, 255
        %s181 = scalar_select %p180, %s179, 255
        %s182 = smul.addr %s181, 2
        %s183 = smul.addr %s182, 4
        %s184 = scalar_lea.vmem %s0, %s183
        %p185 = pneg %p50
        %p186 = pneg %p47
        %p187 = scmp.lt.s32.totalorder %s22, 0
        %s188 = scalar_select %p187, %s22, 0
        %s189 = smul.addr %s188, 4
        %s190 = scalar_lea.vmem %s1, %s189
        %p191 = pneg %p76
        %p192 = pneg %p73
        %p193 = scmp.lt.s32.totalorder %s22, 0
        %s194 = scalar_select %p193, %s22, 0
        %s195 = scalar_lea.vmem %s2, %s194
        %p196 = pneg %p102
        %p197 = pneg %p99
        %p198 = pneg %p130
        %p199 = pneg %p127
        %s200 = sand.u32 %s117, 1
        %s201 = scalar_lea.sflag [#allocation3], %s200
        %s202 = sand.u32 %s117, 1
        %s203 = smul.addr %s202, 128
        %s204 = scalar_lea.vmem [#allocation2], %s203
        %s205 = smul.u32 32, %s21
        %p206 = scmp.lt.s32.totalorder %s205, 255
        %s207 = scalar_select %p206, %s205, 255
        %s208 = smul.addr %s207, 2
        %s209 = smul.addr %s208, 4
        %s210 = scalar_lea.vmem %s0, %s209
        %s211 = smul.u32 32, %s21
        %p212 = scmp.lt.s32.totalorder %s22, 0
        %s213 = scalar_select %p212, %s22, 0
        %s214 = smul.addr %s213, 4
        %s215 = scalar_lea.vmem %s1, %s214
        %p216 = scmp.lt.s32.totalorder %s22, 0
        %s217 = scalar_select %p216, %s22, 0
        %s218 = scalar_lea.vmem %s2, %s217
        %s219 = smul.u32 32, %s21
        %v220 = vld [vmem:[%s210] sm:$0xff]
        %v221 = vld [vmem:[%s210 + $0x8] sm:$0xff]
        %v222 = vld [vmem:[%s210 + $0x10] sm:$0xff]
        %v223 = vld [vmem:[%s210 + $0x18] sm:$0xff]
        %v224 = vld [vmem:[%s210 + $0x20] sm:$0xff]
        %v225 = vld [vmem:[%s210 + $0x28] sm:$0xff]
        %v226 = vld [vmem:[%s210 + $0x30] sm:$0xff]
        %v227 = vld [vmem:[%s210 + $0x38] sm:$0xff]
        %v228 = vld [vmem:[%s210 + $0x40] sm:$0xff]
        %v229 = vld [vmem:[%s210 + $0x48] sm:$0xff]
        %v230 = vld [vmem:[%s210 + $0x50] sm:$0xff]
        %v231 = vld [vmem:[%s210 + $0x58] sm:$0xff]
        %v232 = vld [vmem:[%s210 + $0x60] sm:$0xff]
        %v233 = vld [vmem:[%s210 + $0x68] sm:$0xff]
        %v234 = vld [vmem:[%s210 + $0x70] sm:$0xff]
        %v235 = vld [vmem:[%s210 + $0x78] sm:$0xff]
        %v236 = vld [vmem:[%s210 + $0x80] sm:$0xff]
        %v237 = vld [vmem:[%s210 + $0x88] sm:$0xff]
        %v238 = vld [vmem:[%s210 + $0x90] sm:$0xff]
        %v239 = vld [vmem:[%s210 + $0x98] sm:$0xff]
        %v240 = vld [vmem:[%s210 + $0xa0] sm:$0xff]
        %v241 = vld [vmem:[%s210 + $0xa8] sm:$0xff]
        %v242 = vld [vmem:[%s210 + $0xb0] sm:$0xff]
        %v243 = vld [vmem:[%s210 + $0xb8] sm:$0xff]
        %v244 = vld [vmem:[%s210 + $0xc0] sm:$0xff]
        %v245 = vld [vmem:[%s210 + $0xc8] sm:$0xff]
        %v246 = vld [vmem:[%s210 + $0xd0] sm:$0xff]
        %v247 = vld [vmem:[%s210 + $0xd8] sm:$0xff]
        %v248 = vld [vmem:[%s210 + $0xe0] sm:$0xff]
        %v249 = vld [vmem:[%s210 + $0xe8] sm:$0xff]
        %v250 = vld [vmem:[%s210 + $0xf0] sm:$0xff]
        %v251 = vld [vmem:[%s210 + $0xf8] sm:$0xff]
        %v252 = vld [vmem:[%s215] sm:$0xf]
        %v253 = vld [vmem:[%s215 + $0x4] sm:$0xf]
        %v254 = vld [vmem:[%s215 + $0x8] sm:$0xf]
        %v255 = vld [vmem:[%s215 + $0xc] sm:$0xf]
        %v256 = vld [vmem:[%s215 + $0x10] sm:$0xf]
        %v257 = vld [vmem:[%s215 + $0x14] sm:$0xf]
        %v258 = vld [vmem:[%s215 + $0x18] sm:$0xf]
        %v259 = vld [vmem:[%s215 + $0x1c] sm:$0xf]
        %v260 = vld [vmem:[%s215 + $0x20] sm:$0xf]
        %v261 = vld [vmem:[%s215 + $0x24] sm:$0xf]
        %v262 = vld [vmem:[%s215 + $0x28] sm:$0xf]
        %v263 = vld [vmem:[%s215 + $0x2c] sm:$0xf]
        %v264 = vld [vmem:[%s215 + $0x30] sm:$0xf]
        %v265 = vld [vmem:[%s215 + $0x34] sm:$0xf]
        %v266 = vld [vmem:[%s215 + $0x38] sm:$0xf]
        %v267 = vld [vmem:[%s215 + $0x3c] sm:$0xf]
        %v268 = vld [vmem:[%s215 + $0x40] sm:$0xf]
        %v269 = vld [vmem:[%s215 + $0x44] sm:$0xf]
        %v270 = vld [vmem:[%s215 + $0x48] sm:$0xf]
        %v271 = vld [vmem:[%s215 + $0x4c] sm:$0xf]
        %v272 = vld [vmem:[%s215 + $0x50] sm:$0xf]
        %v273 = vld [vmem:[%s215 + $0x54] sm:$0xf]
        %v274 = vld [vmem:[%s215 + $0x58] sm:$0xf]
        %v275 = vld [vmem:[%s215 + $0x5c] sm:$0xf]
        %v276 = vld [vmem:[%s215 + $0x60] sm:$0xf]
        %v277 = vld [vmem:[%s215 + $0x64] sm:$0xf]
        %v278 = vld [vmem:[%s215 + $0x68] sm:$0xf]
        %v279 = vld [vmem:[%s215 + $0x6c] sm:$0xf]
        %v280 = vld [vmem:[%s215 + $0x70] sm:$0xf]
        %v281 = vld [vmem:[%s215 + $0x74] sm:$0xf]
        %v282 = vld [vmem:[%s215 + $0x78] sm:$0xf]
        %v283 = vld [vmem:[%s215 + $0x7c] sm:$0xf]
        %v284 = vld [vmem:[%s218] sm:$0x1]
        %v286 = vperm.slane %v284, 0
        %v320 = vunpack.c.l.b16 %v220
        %v321 = vunpack.c.h.b16 %v220
        %v322 = vunpack.c.l.b16 %v221
        %v323 = vunpack.c.h.b16 %v221
        %v324 = vunpack.c.l.b16 %v222
        %v325 = vunpack.c.h.b16 %v222
        %v326 = vunpack.c.l.b16 %v223
        %v327 = vunpack.c.h.b16 %v223
        %v328 = vunpack.c.l.b16 %v224
        %v329 = vunpack.c.h.b16 %v224
        %v330 = vunpack.c.l.b16 %v225
        %v331 = vunpack.c.h.b16 %v225
        %v332 = vunpack.c.l.b16 %v226
        %v333 = vunpack.c.h.b16 %v226
        %v334 = vunpack.c.l.b16 %v227
        %v335 = vunpack.c.h.b16 %v227
        %v336 = vunpack.c.l.b16 %v228
        %v337 = vunpack.c.h.b16 %v228
        %v338 = vunpack.c.l.b16 %v229
        %v339 = vunpack.c.h.b16 %v229
        %v340 = vunpack.c.l.b16 %v230
        %v341 = vunpack.c.h.b16 %v230
        %v342 = vunpack.c.l.b16 %v231
        %v343 = vunpack.c.h.b16 %v231
        %v344 = vunpack.c.l.b16 %v232
        %v345 = vunpack.c.h.b16 %v232
        %v346 = vunpack.c.l.b16 %v233
        %v347 = vunpack.c.h.b16 %v233
        %v348 = vunpack.c.l.b16 %v234
        %v349 = vunpack.c.h.b16 %v234
        %v350 = vunpack.c.l.b16 %v235
        %v351 = vunpack.c.h.b16 %v235
        %v352 = vunpack.c.l.b16 %v236
        %v353 = vunpack.c.h.b16 %v236
        %v354 = vunpack.c.l.b16 %v237
        %v355 = vunpack.c.h.b16 %v237
        %v356 = vunpack.c.l.b16 %v238
        %v357 = vunpack.c.h.b16 %v238
        %v358 = vunpack.c.l.b16 %v239
        %v359 = vunpack.c.h.b16 %v239
        %v360 = vunpack.c.l.b16 %v240
        %v361 = vunpack.c.h.b16 %v240
        %v362 = vunpack.c.l.b16 %v241
        %v363 = vunpack.c.h.b16 %v241
        %v364 = vunpack.c.l.b16 %v242
        %v365 = vunpack.c.h.b16 %v242
        %v366 = vunpack.c.l.b16 %v243
        %v367 = vunpack.c.h.b16 %v243
        %v368 = vunpack.c.l.b16 %v244
        %v369 = vunpack.c.h.b16 %v244
        %v370 = vunpack.c.l.b16 %v245
        %v371 = vunpack.c.h.b16 %v245
        %v372 = vunpack.c.l.b16 %v246
        %v373 = vunpack.c.h.b16 %v246
        %v374 = vunpack.c.l.b16 %v247
        %v375 = vunpack.c.h.b16 %v247
        %v376 = vunpack.c.l.b16 %v248
        %v377 = vunpack.c.h.b16 %v248
        %v378 = vunpack.c.l.b16 %v249
        %v379 = vunpack.c.h.b16 %v249
        %v380 = vunpack.c.l.b16 %v250
        %v381 = vunpack.c.h.b16 %v250
        %v382 = vunpack.c.l.b16 %v251
        %v383 = vunpack.c.h.b16 %v251
        %v384 = vpack.c.b16 %v322, %v320
        %v385 = vpack.c.b16 %v323, %v321
        %v386 = vpack.c.b16 %v326, %v324
        %v387 = vpack.c.b16 %v327, %v325
        %v388 = vpack.c.b16 %v330, %v328
        %v389 = vpack.c.b16 %v331, %v329
        %v390 = vpack.c.b16 %v334, %v332
        %v391 = vpack.c.b16 %v335, %v333
        %v392 = vpack.c.b16 %v338, %v336
        %v393 = vpack.c.b16 %v339, %v337
        %v394 = vpack.c.b16 %v342, %v340
        %v395 = vpack.c.b16 %v343, %v341
        %v396 = vpack.c.b16 %v346, %v344
        %v397 = vpack.c.b16 %v347, %v345
        %v398 = vpack.c.b16 %v350, %v348
        %v399 = vpack.c.b16 %v351, %v349
        %v400 = vpack.c.b16 %v354, %v352
        %v401 = vpack.c.b16 %v355, %v353
        %v402 = vpack.c.b16 %v358, %v356
        %v403 = vpack.c.b16 %v359, %v357
        %v404 = vpack.c.b16 %v362, %v360
        %v405 = vpack.c.b16 %v363, %v361
        %v406 = vpack.c.b16 %v366, %v364
        %v407 = vpack.c.b16 %v367, %v365
        %v408 = vpack.c.b16 %v370, %v368
        %v409 = vpack.c.b16 %v371, %v369
        %v410 = vpack.c.b16 %v374, %v372
        %v411 = vpack.c.b16 %v375, %v373
        %v412 = vpack.c.b16 %v378, %v376
        %v413 = vpack.c.b16 %v379, %v377
        %v414 = vpack.c.b16 %v382, %v380
        %v415 = vpack.c.b16 %v383, %v381
        %v480 = vunpack.c.l.b16 %v252
        %v481 = vunpack.c.l.b16 %v253
        %v482 = vunpack.c.l.b16 %v254
        %v483 = vunpack.c.l.b16 %v255
        %v484 = vunpack.c.l.b16 %v256
        %v485 = vunpack.c.l.b16 %v257
        %v486 = vunpack.c.l.b16 %v258
        %v487 = vunpack.c.l.b16 %v259
        %v488 = vunpack.c.l.b16 %v260
        %v489 = vunpack.c.l.b16 %v261
        %v490 = vunpack.c.l.b16 %v262
        %v491 = vunpack.c.l.b16 %v263
        %v492 = vunpack.c.l.b16 %v264
        %v493 = vunpack.c.l.b16 %v265
        %v494 = vunpack.c.l.b16 %v266
        %v495 = vunpack.c.l.b16 %v267
        %v496 = vunpack.c.l.b16 %v268
        %v497 = vunpack.c.l.b16 %v269
        %v498 = vunpack.c.l.b16 %v270
        %v499 = vunpack.c.l.b16 %v271
        %v500 = vunpack.c.l.b16 %v272
        %v501 = vunpack.c.l.b16 %v273
        %v502 = vunpack.c.l.b16 %v274
        %v503 = vunpack.c.l.b16 %v275
        %v504 = vunpack.c.l.b16 %v276
        %v505 = vunpack.c.l.b16 %v277
        %v506 = vunpack.c.l.b16 %v278
        %v507 = vunpack.c.l.b16 %v279
        %v508 = vunpack.c.l.b16 %v280
        %v509 = vunpack.c.l.b16 %v281
        %v510 = vunpack.c.l.b16 %v282
        %v511 = vunpack.c.l.b16 %v283
        %v512 = vpack.c.b16 %v481, %v480
        %v513 = vpack.c.b16 %v483, %v482
        %v514 = vpack.c.b16 %v485, %v484
        %v515 = vpack.c.b16 %v487, %v486
        %v516 = vpack.c.b16 %v489, %v488
        %v517 = vpack.c.b16 %v491, %v490
        %v518 = vpack.c.b16 %v493, %v492
        %v519 = vpack.c.b16 %v495, %v494
        %v520 = vpack.c.b16 %v497, %v496
        %v521 = vpack.c.b16 %v499, %v498
        %v522 = vpack.c.b16 %v501, %v500
        %v523 = vpack.c.b16 %v503, %v502
        %v524 = vpack.c.b16 %v505, %v504
        %v525 = vpack.c.b16 %v507, %v506
        %v526 = vpack.c.b16 %v509, %v508
        %v527 = vpack.c.b16 %v511, %v510
        %544 = vmatpush.bf16.msra.mxu0 %v519
        %545 = vmatpush.bf16.msra.mxu0 %v518
        %546 = vmatpush.bf16.msra.mxu0 %v517
        %547 = vmatpush.bf16.msra.mxu0 %v516
        %548 = vmatpush.bf16.msra.mxu0 %v515
        %549 = vmatpush.bf16.msra.mxu0 %v514
        %550 = vmatpush.bf16.msra.mxu0 %v513
        %551 = vmatpush.bf16.msra.mxu0 %v512
        %552 = vmatmul.bf16.gmra.mxu0 %v384
        %v553 = vpop.f32.mrf.mxu0
        %v554 = vadd.f32 %v286, %v553
        %v555 = vpop.f32.mrf.mxu0
        %v556 = vadd.f32 %v286, %v555
        %557 = vmatmul.bf16.gmra.mxu0 %v386
        %v558 = vpop.f32.mrf.mxu0
        %v559 = vadd.f32 %v286, %v558
        %v560 = vpop.f32.mrf.mxu0
        %v561 = vadd.f32 %v286, %v560
        %562 = vmatmul.bf16.gmra.mxu0 %v388
        %v563 = vpop.f32.mrf.mxu0
        %v564 = vadd.f32 %v286, %v563
        %v565 = vpop.f32.mrf.mxu0
        %v566 = vadd.f32 %v286, %v565
        %567 = vmatmul.bf16.gmra.mxu0 %v390
        %v568 = vpop.f32.mrf.mxu0
        %v569 = vadd.f32 %v286, %v568
        %v570 = vpop.f32.mrf.mxu0
        %v571 = vadd.f32 %v286, %v570
        %572 = vmatmul.bf16.gmra.mxu0 %v392
        %v573 = vpop.f32.mrf.mxu0
        %v574 = vadd.f32 %v286, %v573
        %v575 = vpop.f32.mrf.mxu0
        %v576 = vadd.f32 %v286, %v575
        %577 = vmatmul.bf16.gmra.mxu0 %v394
        %v578 = vpop.f32.mrf.mxu0
        %v579 = vadd.f32 %v286, %v578
        %v580 = vpop.f32.mrf.mxu0
        %v581 = vadd.f32 %v286, %v580
        %582 = vmatmul.bf16.gmra.mxu0 %v396
        %v583 = vpop.f32.mrf.mxu0
        %v584 = vadd.f32 %v286, %v583
        %v585 = vpop.f32.mrf.mxu0
        %v586 = vadd.f32 %v286, %v585
        %587 = vmatmul.bf16.gmra.mxu0 %v398
        %v588 = vpop.f32.mrf.mxu0
        %v589 = vadd.f32 %v286, %v588
        %v590 = vpop.f32.mrf.mxu0
        %v591 = vadd.f32 %v286, %v590
        %592 = vmatmul.bf16.gmra.mxu0 %v400
        %v593 = vpop.f32.mrf.mxu0
        %v594 = vadd.f32 %v286, %v593
        %v595 = vpop.f32.mrf.mxu0
        %v596 = vadd.f32 %v286, %v595
        %597 = vmatmul.bf16.gmra.mxu0 %v402
        %v598 = vpop.f32.mrf.mxu0
        %v599 = vadd.f32 %v286, %v598
        %v600 = vpop.f32.mrf.mxu0
        %v601 = vadd.f32 %v286, %v600
        %602 = vmatmul.bf16.gmra.mxu0 %v404
        %v603 = vpop.f32.mrf.mxu0
        %v604 = vadd.f32 %v286, %v603
        %v605 = vpop.f32.mrf.mxu0
        %v606 = vadd.f32 %v286, %v605
        %607 = vmatmul.bf16.gmra.mxu0 %v406
        %v608 = vpop.f32.mrf.mxu0
        %v609 = vadd.f32 %v286, %v608
        %v610 = vpop.f32.mrf.mxu0
        %v611 = vadd.f32 %v286, %v610
        %612 = vmatmul.bf16.gmra.mxu0 %v408
        %v613 = vpop.f32.mrf.mxu0
        %v614 = vadd.f32 %v286, %v613
        %v615 = vpop.f32.mrf.mxu0
        %v616 = vadd.f32 %v286, %v615
        %617 = vmatmul.bf16.gmra.mxu0 %v410
        %v618 = vpop.f32.mrf.mxu0
        %v619 = vadd.f32 %v286, %v618
        %v620 = vpop.f32.mrf.mxu0
        %v621 = vadd.f32 %v286, %v620
        %622 = vmatmul.bf16.gmra.mxu0 %v412
        %v623 = vpop.f32.mrf.mxu0
        %v624 = vadd.f32 %v286, %v623
        %v625 = vpop.f32.mrf.mxu0
        %v626 = vadd.f32 %v286, %v625
        %627 = vmatmul.bf16.gmra.mxu0 %v414
        %v628 = vpop.f32.mrf.mxu0
        %v629 = vadd.f32 %v286, %v628
        %v630 = vpop.f32.mrf.mxu0
        %v631 = vadd.f32 %v286, %v630
        %632 = vdwg.mxu0
        %633 = vmatpush.bf16.msra.mxu0 %v527
        %634 = vmatpush.bf16.msra.mxu0 %v526
        %635 = vmatpush.bf16.msra.mxu0 %v525
        %636 = vmatpush.bf16.msra.mxu0 %v524
        %637 = vmatpush.bf16.msra.mxu0 %v523
        %638 = vmatpush.bf16.msra.mxu0 %v522
        %639 = vmatpush.bf16.msra.mxu0 %v521
        %640 = vmatpush.bf16.msra.mxu0 %v520
        %641 = vmatmul.bf16.gmra.mxu0 %v385
        %v642 = vpop.f32.mrf.mxu0
        %v643 = vadd.f32 %v554, %v642
        %v644 = vpop.f32.mrf.mxu0
        %v645 = vadd.f32 %v556, %v644
        %646 = vmatmul.bf16.gmra.mxu0 %v387
        %v647 = vpop.f32.mrf.mxu0
        %v648 = vadd.f32 %v559, %v647
        %v649 = vpop.f32.mrf.mxu0
        %v650 = vadd.f32 %v561, %v649
        %651 = vmatmul.bf16.gmra.mxu0 %v389
        %v652 = vpop.f32.mrf.mxu0
        %v653 = vadd.f32 %v564, %v652
        %v654 = vpop.f32.mrf.mxu0
        %v655 = vadd.f32 %v566, %v654
        %656 = vmatmul.bf16.gmra.mxu0 %v391
        %v657 = vpop.f32.mrf.mxu0
        %v658 = vadd.f32 %v569, %v657
        %v659 = vpop.f32.mrf.mxu0
        %v660 = vadd.f32 %v571, %v659
        %661 = vmatmul.bf16.gmra.mxu0 %v393
        %v662 = vpop.f32.mrf.mxu0
        %v663 = vadd.f32 %v574, %v662
        %v664 = vpop.f32.mrf.mxu0
        %v665 = vadd.f32 %v576, %v664
        %666 = vmatmul.bf16.gmra.mxu0 %v395
        %v667 = vpop.f32.mrf.mxu0
        %v668 = vadd.f32 %v579, %v667
        %v669 = vpop.f32.mrf.mxu0
        %v670 = vadd.f32 %v581, %v669
        %671 = vmatmul.bf16.gmra.mxu0 %v397
        %v672 = vpop.f32.mrf.mxu0
        %v673 = vadd.f32 %v584, %v672
        %v674 = vpop.f32.mrf.mxu0
        %v675 = vadd.f32 %v586, %v674
        %676 = vmatmul.bf16.gmra.mxu0 %v399
        %v677 = vpop.f32.mrf.mxu0
        %v678 = vadd.f32 %v589, %v677
        %v679 = vpop.f32.mrf.mxu0
        %v680 = vadd.f32 %v591, %v679
        %681 = vmatmul.bf16.gmra.mxu0 %v401
        %v682 = vpop.f32.mrf.mxu0
        %v683 = vadd.f32 %v594, %v682
        %v684 = vpop.f32.mrf.mxu0
        %v685 = vadd.f32 %v596, %v684
        %686 = vmatmul.bf16.gmra.mxu0 %v403
        %v687 = vpop.f32.mrf.mxu0
        %v688 = vadd.f32 %v599, %v687
        %v689 = vpop.f32.mrf.mxu0
        %v690 = vadd.f32 %v601, %v689
        %691 = vmatmul.bf16.gmra.mxu0 %v405
        %v692 = vpop.f32.mrf.mxu0
        %v693 = vadd.f32 %v604, %v692
        %v694 = vpop.f32.mrf.mxu0
        %v695 = vadd.f32 %v606, %v694
        %696 = vmatmul.bf16.gmra.mxu0 %v407
        %v697 = vpop.f32.mrf.mxu0
        %v698 = vadd.f32 %v609, %v697
        %v699 = vpop.f32.mrf.mxu0
        %v700 = vadd.f32 %v611, %v699
        %701 = vmatmul.bf16.gmra.mxu0 %v409
        %v702 = vpop.f32.mrf.mxu0
        %v703 = vadd.f32 %v614, %v702
        %v704 = vpop.f32.mrf.mxu0
        %v705 = vadd.f32 %v616, %v704
        %706 = vmatmul.bf16.gmra.mxu0 %v411
        %v707 = vpop.f32.mrf.mxu0
        %v708 = vadd.f32 %v619, %v707
        %v709 = vpop.f32.mrf.mxu0
        %v710 = vadd.f32 %v621, %v709
        %711 = vmatmul.bf16.gmra.mxu0 %v413
        %v712 = vpop.f32.mrf.mxu0
        %v713 = vadd.f32 %v624, %v712
        %v714 = vpop.f32.mrf.mxu0
        %v715 = vadd.f32 %v626, %v714
        %716 = vmatmul.bf16.gmra.mxu0 %v415
        %v717 = vpop.f32.mrf.mxu0
        %v718 = vadd.f32 %v629, %v717
        %v719 = vpop.f32.mrf.mxu0
        %v720 = vadd.f32 %v631, %v719
        %721 = vdwg.mxu0
        %v722 = vmax.f32 %v643, 0.0
        %v723 = vmax.f32 %v645, 0.0
        %v724 = vmax.f32 %v648, 0.0
        %v725 = vmax.f32 %v650, 0.0
        %v726 = vmax.f32 %v653, 0.0
        %v727 = vmax.f32 %v655, 0.0
        %v728 = vmax.f32 %v658, 0.0
        %v729 = vmax.f32 %v660, 0.0
        %v730 = vmax.f32 %v663, 0.0
        %v731 = vmax.f32 %v665, 0.0
        %v732 = vmax.f32 %v668, 0.0
        %v733 = vmax.f32 %v670, 0.0
        %v734 = vmax.f32 %v673, 0.0
        %v735 = vmax.f32 %v675, 0.0
        %v736 = vmax.f32 %v678, 0.0
        %v737 = vmax.f32 %v680, 0.0
        %v738 = vmax.f32 %v683, 0.0
        %v739 = vmax.f32 %v685, 0.0
        %v740 = vmax.f32 %v688, 0.0
        %v741 = vmax.f32 %v690, 0.0
        %v742 = vmax.f32 %v693, 0.0
        %v743 = vmax.f32 %v695, 0.0
        %v744 = vmax.f32 %v698, 0.0
        %v745 = vmax.f32 %v700, 0.0
        %v746 = vmax.f32 %v703, 0.0
        %v747 = vmax.f32 %v705, 0.0
        %v748 = vmax.f32 %v708, 0.0
        %v749 = vmax.f32 %v710, 0.0
        %v750 = vmax.f32 %v713, 0.0
        %v751 = vmax.f32 %v715, 0.0
        %v752 = vmax.f32 %v718, 0.0
        %v753 = vmax.f32 %v720, 0.0
        %v754 = vpack.c.bf16 %v722, %v722
        %v755 = vpack.c.bf16 %v723, %v723
        %v756 = vpack.c.bf16 %v724, %v724
        %v757 = vpack.c.bf16 %v725, %v725
        %v758 = vpack.c.bf16 %v726, %v726
        %v759 = vpack.c.bf16 %v727, %v727
        %v760 = vpack.c.bf16 %v728, %v728
        %v761 = vpack.c.bf16 %v729, %v729
        %v762 = vpack.c.bf16 %v730, %v730
        %v763 = vpack.c.bf16 %v731, %v731
        %v764 = vpack.c.bf16 %v732, %v732
        %v765 = vpack.c.bf16 %v733, %v733
        %v766 = vpack.c.bf16 %v734, %v734
        %v767 = vpack.c.bf16 %v735, %v735
        %v768 = vpack.c.bf16 %v736, %v736
        %v769 = vpack.c.bf16 %v737, %v737
        %v770 = vpack.c.bf16 %v738, %v738
        %v771 = vpack.c.bf16 %v739, %v739
        %v772 = vpack.c.bf16 %v740, %v740
        %v773 = vpack.c.bf16 %v741, %v741
        %v774 = vpack.c.bf16 %v742, %v742
        %v775 = vpack.c.bf16 %v743, %v743
        %v776 = vpack.c.bf16 %v744, %v744
        %v777 = vpack.c.bf16 %v745, %v745
        %v778 = vpack.c.bf16 %v746, %v746
        %v779 = vpack.c.bf16 %v747, %v747
        %v780 = vpack.c.bf16 %v748, %v748
        %v781 = vpack.c.bf16 %v749, %v749
        %v782 = vpack.c.bf16 %v750, %v750
        %v783 = vpack.c.bf16 %v751, %v751
        %v784 = vpack.c.bf16 %v752, %v752
        %v785 = vpack.c.bf16 %v753, %v753
        %786 = vst [vmem:[%s204] sm:$0xf] %v754
        %787 = vst [vmem:[%s204 + $0x4] sm:$0xf] %v755
        %788 = vst [vmem:[%s204 + $0x8] sm:$0xf] %v756
        %789 = vst [vmem:[%s204 + $0xc] sm:$0xf] %v757
        %790 = vst [vmem:[%s204 + $0x10] sm:$0xf] %v758
        %791 = vst [vmem:[%s204 + $0x14] sm:$0xf] %v759
        %792 = vst [vmem:[%s204 + $0x18] sm:$0xf] %v760
        %793 = vst [vmem:[%s204 + $0x1c] sm:$0xf] %v761
        %794 = vst [vmem:[%s204 + $0x20] sm:$0xf] %v762
        %795 = vst [vmem:[%s204 + $0x24] sm:$0xf] %v763
        %796 = vst [vmem:[%s204 + $0x28] sm:$0xf] %v764
        %797 = vst [vmem:[%s204 + $0x2c] sm:$0xf] %v765
        %798 = vst [vmem:[%s204 + $0x30] sm:$0xf] %v766
        %799 = vst [vmem:[%s204 + $0x34] sm:$0xf] %v767
        %800 = vst [vmem:[%s204 + $0x38] sm:$0xf] %v768
        %801 = vst [vmem:[%s204 + $0x3c] sm:$0xf] %v769
        %802 = vst [vmem:[%s204 + $0x40] sm:$0xf] %v770
        %803 = vst [vmem:[%s204 + $0x44] sm:$0xf] %v771
        %804 = vst [vmem:[%s204 + $0x48] sm:$0xf] %v772
        %805 = vst [vmem:[%s204 + $0x4c] sm:$0xf] %v773
        %806 = vst [vmem:[%s204 + $0x50] sm:$0xf] %v774
        %807 = vst [vmem:[%s204 + $0x54] sm:$0xf] %v775
        %808 = vst [vmem:[%s204 + $0x58] sm:$0xf] %v776
        %809 = vst [vmem:[%s204 + $0x5c] sm:$0xf] %v777
        %810 = vst [vmem:[%s204 + $0x60] sm:$0xf] %v778
        %811 = vst [vmem:[%s204 + $0x64] sm:$0xf] %v779
        %812 = vst [vmem:[%s204 + $0x68] sm:$0xf] %v780
        %813 = vst [vmem:[%s204 + $0x6c] sm:$0xf] %v781
        %814 = vst [vmem:[%s204 + $0x70] sm:$0xf] %v782
        %815 = vst [vmem:[%s204 + $0x74] sm:$0xf] %v783
        %816 = vst [vmem:[%s204 + $0x78] sm:$0xf] %v784
        %817 = vst [vmem:[%s204 + $0x7c] sm:$0xf] %v785
        %s818 = sand.u32 %s117, 1
        %s819 = scalar_lea.sflag [#allocation3], %s818
        %s820 = sand.u32 %s117, 1
        %s821 = smul.addr %s820, 128
        %s822 = scalar_lea.vmem [#allocation2], %s821
        // Predicated region
        $region33: #{_conv2d_impl.1} parent=31 // pred_check
          %p823 = pneg %p127
        $region34: #{_conv2d_impl.1} parent=31 // pred_check_branch
          %825 = sbr.rel (%p823) target = $region36
        $region35: #{_conv2d_impl.1} parent=31 // pred_region
          %s826 = smul.u32 32, %s21
          %828 = vsyncadd %s819, 0
          %s829 = sadd.s32 %s22, %s826
          %s830 = smul.addr %s829, 4
          %s831 = scalar_lea.hbm %s3, %s830
          %s832 = sshll.u32 %s822, 4
          %s833 = int_to_ptr.vmem [resolvable:$true] %s832
          %s834 = sshll.u32 %s831, 4
          %s835 = int_to_ptr.hbm [resolvable:$true] %s834
          %840 = dma.vmem_to_hbm [thread:$0]  %s833, 2048, %s835, %s819, 64, 64, 4
        $region36: #{_conv2d_impl.1} parent=31 // pred_fallthru
          _
      $region32: #{_conv2d_impl.1} parent=5 // pred_fallthru
        _
      %p841 = scmp.le.s32.totalorder 2, %s12
      // Predicated region
      $region37: #{_conv2d_impl.1} parent=5 // pred_check
        %p842 = pneg %p841
      $region38: #{_conv2d_impl.1} parent=5 // pred_check_branch
        %844 = sbr.rel (%p842) target = $region40
      $region39: #{_conv2d_impl.1} parent=5 // pred_region
        %s845 = ssub.s32 %s12, 2
        // Predicated region
        $region41: #{_conv2d_impl.1} parent=39 // pred_check
          %p846 = pneg %p133
        $region42: #{_conv2d_impl.1} parent=39 // pred_check_branch
          %848 = sbr.rel (%p846) target = $region44
        $region43: #{_conv2d_impl.1} parent=39 // pred_region
          %s849 = sand.u32 %s118, 1
          %s850 = scalar_lea.sflag [#allocation3], %s849
          %s851 = sand.u32 %s118, 1
          %s852 = smul.addr %s851, 128
          %s853 = scalar_lea.vmem [#allocation2], %s852
          %855 = dma.done %s850, 2048
        $region44: #{_conv2d_impl.1} parent=39 // pred_fallthru
          _
      $region40: #{_conv2d_impl.1} parent=5 // pred_fallthru
        _
    $region6: #{_conv2d_impl.1} parent=1 // loop_footer
      %s16 = sadd.s32 1, %s12
    $region7: #{_conv2d_impl.1} parent=1 // loop_footer_branch
      %11 = sbr.rel target = $region3
    $region8: #{_conv2d_impl.1} parent=1 // loop_exit
      _
    %856 = vsyncpa [#allocation3], 1
    %s857 = scalar_lea.sflag [#allocation3], 1
    %858 = vsyncpa %s857, 1

</llo_original>
